<compile_context>
chip_gen: v7x
topology: tpu7x:2x2x1
jax: 0.10.0
libtpu: 0.0.40
codegen_flags: <defaults>
</compile_context>

<pallas_src>
import functools

import jax
import jax.numpy as jnp
from jax.experimental import pallas as pl
from jax.experimental.pallas import tpu as pltpu

DP = 128  # lane-dense padded feature dimension (d_model == d_internal padded)


def _gelu_tanh(x):
    # tanh-approximate GELU (EUP tanh). PyTorch nn.GELU() default is the erf
    # form; max abs deviation of the tanh form is ~3e-4.
    c = 0.7978845608028654  # sqrt(2/pi)
    return 0.5 * x * (1.0 + jnp.tanh(c * (x + 0.044715 * x * x * x)))


def _softmax_lastdim_exact(x):
    m = jnp.max(x, axis=-1, keepdims=True)
    e = jnp.exp(x - m)
    return e / jnp.sum(e, axis=-1, keepdims=True)


def transformer_fwd_kernel(
    x_ref, pos_ref, wqkv_ref, wfused_ref, bias_ref,
    pred_ref, attn_ref,
    *, d_model, d_pad, seq_len,
):
    f32 = jnp.float32
    S = seq_len

    # input = indices + (indices + pos_emb)   (batched PositionalEncoding)
    x = 2.0 * x_ref[...] + pos_ref[0:S, :]                        # [S, DP]

    # --- TransformerLayer: fused Q/K/V projection; Q pre-scaled by 1/sqrt(d) ---
    qkv = jnp.dot(x, wqkv_ref[...], preferred_element_type=f32)   # [S, 3*DP]
    q = qkv[:, 0 * d_pad:1 * d_pad]
    k = qkv[:, 1 * d_pad:2 * d_pad]
    v = qkv[:, 2 * d_pad:3 * d_pad]

    # scores = (q / sqrt(d_model)) @ k^T without an explicit transpose
    # (contract the feature dims directly).
    scores = jax.lax.dot_general(
        q, k,
        dimension_numbers=(((1,), (1,)), ((), ())),
        preferred_element_type=f32,
    )                                                             # [S, S]

    # nn.Softmax(dim=1) on a 2-D [S, S] == last-dim softmax. Exact divide:
    # the attention map is a module output, keep it numerically faithful.
    p = _softmax_lastdim_exact(scores)
    # TODO(synk): attn output left at [S, S] (masked store); at S=8 the cost is
    # negligible and it avoids an unaligned lane-concat in the lowering.
    attn_ref[...] = p

    att = jnp.dot(p, v, preferred_element_type=f32) + x           # residual add

    # Static 128-aligned slices of the fused weight slab / stacked biases.
    w1 = wfused_ref[:, 0 * d_pad:1 * d_pad]
    w2 = wfused_ref[:, 1 * d_pad:2 * d_pad]
    wl = wfused_ref[:, 2 * d_pad:3 * d_pad]
    wl2 = wfused_ref[:, 3 * d_pad:4 * d_pad]
    b1 = bias_ref[0:1, :]
    b2 = bias_ref[1:2, :]
    bl = bias_ref[2:3, :]
    bl2 = bias_ref[3:4, :]

    h = _gelu_tanh(jnp.dot(att, w1, preferred_element_type=f32) + b1)
    layer_out = jnp.dot(h, w2, preferred_element_type=f32) + b2 + att

    # --- Transformer head: Linear -> GELU -> Linear -> Softmax ---
    lin = jnp.dot(layer_out, wl, preferred_element_type=f32) + bl
    lin2 = jnp.dot(_gelu_tanh(lin), wl2, preferred_element_type=f32) + bl2

    # Mask padded feature lanes so the implicit last-dim softmax only covers
    # the d_model real logits (padded lanes -> exp underflows to exactly 0).
    lane = jax.lax.broadcasted_iota(jnp.int32, lin2.shape, 1)
    logits = jnp.where(lane < d_model, lin2, -1e30)
    pred_ref[...] = _softmax_lastdim_exact(logits)


def prepare_params(params, *, d_model, d_internal):
    """One-time host-side parameter prep (cache and reuse across calls):
    pad everything to the lane-dense width DP, fuse wq|wk|wv and w1|w2|wl|wl2,
    stack the four biases into one [8, DP] array, and fold the 1/sqrt(d_model)
    attention scale into the Q columns. Removes ~10 per-call XLA pad/concat ops."""
    assert d_internal == d_model

    def pad_c(a):   # pad trailing (feature) dim to DP
        return jnp.pad(a, ((0, 0), (0, DP - a.shape[1])))

    def pad_rc(a):  # pad both dims of a weight to DP x DP
        return jnp.pad(a, ((0, DP - a.shape[0]), (0, DP - a.shape[1])))

    scale = 1.0 / (d_model ** 0.5)
    wqkv = jnp.concatenate(
        [pad_rc(params["wq"] * scale), pad_rc(params["wk"]), pad_rc(params["wv"])],
        axis=1,
    )                                                              # [DP, 3*DP]
    wfused = jnp.concatenate(
        [pad_rc(params["w1"]), pad_rc(params["w2"]),
         pad_rc(params["wl"]), pad_rc(params["wl2"])],
        axis=1,
    )                                                              # [DP, 4*DP]
    biases = jnp.concatenate(
        [pad_c(params["b1"]), pad_c(params["b2"]),
         pad_c(params["bl"]), pad_c(params["bl2"]),
         jnp.zeros((4, DP), jnp.float32)],
        axis=0,
    )                                                              # [8, DP]
    pos = pad_c(params["pos_emb"])                                 # [num_positions, DP]

    prepped = {"pos_emb": pos, "wqkv": wqkv, "wfused": wfused, "biases": biases}
    # Materialize on device once so every forward call reuses the same buffers.
    return jax.tree_util.tree_map(jax.block_until_ready, prepped)


def transformer_forward(indices, prepped, *, d_model, d_internal):
    """indices: float32 [batch, seq, d_model]; prepped: output of prepare_params.
    Returns (predictions [seq, d_model], [attention_map [seq, seq]]) exactly like
    the PyTorch module with num_layers=1."""
    B, S, D = indices.shape
    assert D == d_model and d_internal == d_model

    # Only batch element 0 reaches the layers (as in the reference). This pad is
    # the single per-call host-side op; all parameters are pre-padded/fused.
    x0 = jnp.pad(indices[0], ((0, 0), (0, DP - d_model)))          # [S, DP]

    args = (x0, prepped["pos_emb"], prepped["wqkv"], prepped["wfused"], prepped["biases"])

    # advisory cost estimate for XLA's scheduler
    flops = (2 * S * DP * 3 * DP) + (2 * S * DP * S) + (2 * S * S * DP) + 4 * (2 * S * DP * DP)
    transc = 2 * S * DP + S * S + S * DP
    n_elems = sum(int(a.size) for a in args) + S * DP + S * S
    cost = pl.CostEstimate(flops=flops, transcendentals=transc, bytes_accessed=4 * n_elems)

    vmem_spec = lambda: pl.BlockSpec(memory_space=pltpu.MemorySpace.VMEM)

    # Grid-free single invocation: the whole problem (<1 MB) is VMEM-resident;
    # a grid/double-buffering would only add per-step pipeline overhead here.
    # TODO(synk): the reference only processes batch element 0, so there is a
    # single tiny problem instance; nothing to shard onto v7x's second TensorCore.
    pred_p, attn = pl.pallas_call(
        functools.partial(transformer_fwd_kernel, d_model=d_model, d_pad=DP, seq_len=S),
        in_specs=[vmem_spec() for _ in args],
        out_specs=(vmem_spec(), vmem_spec()),
        out_shape=(
            jax.ShapeDtypeStruct((S, DP), jnp.float32),   # predictions (padded lanes)
            jax.ShapeDtypeStruct((S, S), jnp.float32),    # attention map
        ),
        cost_estimate=cost,
    )(*args)

    return pred_p[:, :d_model], [attn]


def init_params(key, *, vocab_size, num_positions, d_model, d_internal):
    # Deterministic synthetic parameters (shapes match the nn.Module __init__).
    # Linear weights are stored pre-transposed ([in, out]) so the kernel does x @ W.
    del vocab_size  # token embedding is never applied in the reference forward
    ks = jax.random.split(key, 12)
    n = lambda k, shape: (0.1 * jax.random.normal(k, shape, jnp.float32))
    return {
        "pos_emb": n(ks[0], (num_positions, d_model)),
        "wq": n(ks[1], (d_model, d_internal)),
        "wk": n(ks[2], (d_model, d_internal)),
        "wv": n(ks[3], (d_model, d_internal)),
        "w1": n(ks[4], (d_model, d_internal)),   # TransformerLayer.linear1
        "b1": n(ks[5], (1, d_internal)),
        "w2": n(ks[6], (d_model, d_model)),      # TransformerLayer.linear2
        "b2": n(ks[7], (1, d_model)),
        "wl": n(ks[8], (d_model, d_internal)),   # Transformer.linear
        "bl": n(ks[9], (1, d_internal)),
        "wl2": n(ks[10], (d_internal, d_model)), # Transformer.linear2
        "bl2": n(ks[11], (1, d_model)),
    }


if __name__ == "__main__":
    # small shapes consistent with the module's forward
    B, S = 2, 8
    d_model = d_internal = 32
    num_positions = 20
    vocab_size = 50
    # TODO(synk): num_layers > 1 is not representable — the reference loop indexes
    # `input[0]` each iteration, which only type-checks for a single layer.
    num_layers = 1

    key = jax.random.PRNGKey(0)
    k_params, k_x = jax.random.split(key)
    params = init_params(
        k_params,
        vocab_size=vocab_size,
        num_positions=num_positions,
        d_model=d_model,
        d_internal=d_internal,
    )
    # One-time parameter prep (padding / fusion / scale folding), cached.
    prepped = prepare_params(params, d_model=d_model, d_internal=d_internal)

    indices = jax.random.normal(k_x, (B, S, d_model), jnp.float32)

    predictions, attention_maps = transformer_forward(
        indices, prepped, d_model=d_model, d_internal=d_internal
    )
    jax.block_until_ready((predictions, attention_maps))

    assert predictions.shape == (S, d_model)
    assert attention_maps[0].shape == (S, S)
    assert bool(jnp.all(jnp.isfinite(predictions)))
    # rows of both softmax outputs should sum to ~1
    assert bool(jnp.all(jnp.abs(jnp.sum(predictions, axis=-1) - 1.0) < 1e-5))
    assert bool(jnp.all(jnp.abs(jnp.sum(attention_maps[0], axis=-1) - 1.0) < 1e-5))
    print("KERNEL_OK")
</pallas_src>

<mosaic_0001>
module attributes {stable_mosaic.version = 11 : i64} {
  func.func @transformer_fwd_kernel(%arg0: memref<8x128xf32, #tpu.memory_space<vmem>>, %arg1: memref<20x128xf32, #tpu.memory_space<vmem>>, %arg2: memref<128x384xf32, #tpu.memory_space<vmem>>, %arg3: memref<128x512xf32, #tpu.memory_space<vmem>>, %arg4: memref<8x128xf32, #tpu.memory_space<vmem>>, %arg5: memref<8x128xf32, #tpu.memory_space<vmem>>, %arg6: memref<8x8xf32, #tpu.memory_space<vmem>>) attributes {dimension_semantics = [], scalar_prefetch = 0 : i64, scratch_operands = 0 : i64, tpu.core_type = #tpu.core_type<tc>} {
    %c0 = arith.constant 0 : index
    %c0_0 = arith.constant 0 : index
    %0 = vector.load %arg0[%c0, %c0_0] : memref<8x128xf32, #tpu.memory_space<vmem>>, vector<8x128xf32>
    %cst = arith.constant 2.000000e+00 : f32
    %1 = vector.broadcast %cst : f32 to vector<8x128xf32>
    %2 = arith.mulf %1, %0 : vector<8x128xf32>
    %c0_1 = arith.constant 0 : index
    %c0_2 = arith.constant 0 : index
    %3 = vector.load %arg1[%c0_1, %c0_2] : memref<20x128xf32, #tpu.memory_space<vmem>>, vector<8x128xf32>
    %4 = arith.addf %2, %3 : vector<8x128xf32>
    %c0_3 = arith.constant 0 : index
    %c0_4 = arith.constant 0 : index
    %5 = vector.load %arg2[%c0_3, %c0_4] : memref<128x384xf32, #tpu.memory_space<vmem>>, vector<128x384xf32>
    %cst_5 = arith.constant dense<0.000000e+00> : vector<8x384xf32>
    %6 = tpu.matmul %4, %5, %cst_5 {dimension_numbers = #tpu.dot_dimension_numbers<[1], [0], [0], [1], [0, 0, 1, 1], [], []>} : vector<8x128xf32>, vector<128x384xf32>, vector<8x384xf32> -> vector<8x384xf32>
    %7 = vector.extract_strided_slice %6 {offsets = [0, 0], sizes = [8, 128], strides = [1, 1]} : vector<8x384xf32> to vector<8x128xf32>
    %8 = vector.extract_strided_slice %6 {offsets = [0, 128], sizes = [8, 128], strides = [1, 1]} : vector<8x384xf32> to vector<8x128xf32>
    %9 = vector.extract_strided_slice %6 {offsets = [0, 256], sizes = [8, 128], strides = [1, 1]} : vector<8x384xf32> to vector<8x128xf32>
    %cst_6 = arith.constant dense<0.000000e+00> : vector<8x8xf32>
    %10 = tpu.matmul %7, %8, %cst_6 {dimension_numbers = #tpu.dot_dimension_numbers<[1], [1], [0], [0], [0, 0, 1, 0], [], []>} : vector<8x128xf32>, vector<8x128xf32>, vector<8x8xf32> -> vector<8x8xf32>
    %cst_7 = arith.constant dense<0xFF800000> : vector<8xf32>
    %11 = vector.multi_reduction <maximumf>, %10, %cst_7 [1] : vector<8x8xf32> to vector<8xf32>
    %12 = vector.shape_cast %11 : vector<8xf32> to vector<8x1xf32>
    %13 = vector.broadcast %12 : vector<8x1xf32> to vector<8x8xf32>
    %14 = arith.subf %10, %13 : vector<8x8xf32>
    %15 = math.exp %14 : vector<8x8xf32>
    %cst_8 = arith.constant dense<0.000000e+00> : vector<8xf32>
    %16 = vector.multi_reduction <add>, %15, %cst_8 [1] : vector<8x8xf32> to vector<8xf32>
    %17 = vector.shape_cast %16 : vector<8xf32> to vector<8x1xf32>
    %18 = vector.broadcast %17 : vector<8x1xf32> to vector<8x8xf32>
    %19 = arith.divf %15, %18 : vector<8x8xf32>
    %c0_9 = arith.constant 0 : index
    %c0_10 = arith.constant 0 : index
    %20 = vector.load %arg6[%c0_9, %c0_10] : memref<8x8xf32, #tpu.memory_space<vmem>>, vector<8x8xf32>
    tpu.vector_store %arg6[%c0_9, %c0_10], %19 {strides = array<i32>} : memref<8x8xf32, #tpu.memory_space<vmem>>, vector<8x8xf32>,
    %cst_11 = arith.constant dense<0.000000e+00> : vector<8x128xf32>
    %21 = tpu.matmul %19, %9, %cst_11 {dimension_numbers = #tpu.dot_dimension_numbers<[1], [0], [0], [1], [0, 0, 1, 1], [], []>} : vector<8x8xf32>, vector<8x128xf32>, vector<8x128xf32> -> vector<8x128xf32>
    %22 = arith.addf %21, %4 : vector<8x128xf32>
    %c0_12 = arith.constant 0 : index
    %c0_13 = arith.constant 0 : index
    %23 = vector.load %arg3[%c0_12, %c0_13] : memref<128x512xf32, #tpu.memory_space<vmem>>, vector<128x128xf32>
    %c0_14 = arith.constant 0 : index
    %c128 = arith.constant 128 : index
    %24 = vector.load %arg3[%c0_14, %c128] : memref<128x512xf32, #tpu.memory_space<vmem>>, vector<128x128xf32>
    %c0_15 = arith.constant 0 : index
    %c256 = arith.constant 256 : index
    %25 = vector.load %arg3[%c0_15, %c256] : memref<128x512xf32, #tpu.memory_space<vmem>>, vector<128x128xf32>
    %c0_16 = arith.constant 0 : index
    %c384 = arith.constant 384 : index
    %26 = vector.load %arg3[%c0_16, %c384] : memref<128x512xf32, #tpu.memory_space<vmem>>, vector<128x128xf32>
    %c0_17 = arith.constant 0 : index
    %c0_18 = arith.constant 0 : index
    %27 = vector.load %arg4[%c0_17, %c0_18] : memref<8x128xf32, #tpu.memory_space<vmem>>, vector<1x128xf32>
    %c1 = arith.constant 1 : index
    %c0_19 = arith.constant 0 : index
    %28 = vector.load %arg4[%c1, %c0_19] : memref<8x128xf32, #tpu.memory_space<vmem>>, vector<1x128xf32>
    %c2 = arith.constant 2 : index
    %c0_20 = arith.constant 0 : index
    %29 = vector.load %arg4[%c2, %c0_20] : memref<8x128xf32, #tpu.memory_space<vmem>>, vector<1x128xf32>
    %c3 = arith.constant 3 : index
    %c0_21 = arith.constant 0 : index
    %30 = vector.load %arg4[%c3, %c0_21] : memref<8x128xf32, #tpu.memory_space<vmem>>, vector<1x128xf32>
    %cst_22 = arith.constant dense<0.000000e+00> : vector<8x128xf32>
    %31 = tpu.matmul %22, %23, %cst_22 {dimension_numbers = #tpu.dot_dimension_numbers<[1], [0], [0], [1], [0, 0, 1, 1], [], []>} : vector<8x128xf32>, vector<128x128xf32>, vector<8x128xf32> -> vector<8x128xf32>
    %32 = vector.broadcast %27 : vector<1x128xf32> to vector<8x128xf32>
    %33 = arith.addf %31, %32 : vector<8x128xf32>
    %cst_23 = arith.constant 5.000000e-01 : f32
    %34 = vector.broadcast %cst_23 : f32 to vector<8x128xf32>
    %35 = arith.mulf %34, %33 : vector<8x128xf32>
    %cst_24 = arith.constant 4.471500e-02 : f32
    %36 = vector.broadcast %cst_24 : f32 to vector<8x128xf32>
    %37 = arith.mulf %36, %33 : vector<8x128xf32>
    %38 = arith.mulf %37, %33 : vector<8x128xf32>
    %39 = arith.mulf %38, %33 : vector<8x128xf32>
    %40 = arith.addf %33, %39 : vector<8x128xf32>
    %cst_25 = arith.constant 0.797884583 : f32
    %41 = vector.broadcast %cst_25 : f32 to vector<8x128xf32>
    %42 = arith.mulf %41, %40 : vector<8x128xf32>
    %43 = math.tanh %42 : vector<8x128xf32>
    %cst_26 = arith.constant 1.000000e+00 : f32
    %44 = vector.broadcast %cst_26 : f32 to vector<8x128xf32>
    %45 = arith.addf %44, %43 : vector<8x128xf32>
    %46 = arith.mulf %35, %45 : vector<8x128xf32>
    %cst_27 = arith.constant dense<0.000000e+00> : vector<8x128xf32>
    %47 = tpu.matmul %46, %24, %cst_27 {dimension_numbers = #tpu.dot_dimension_numbers<[1], [0], [0], [1], [0, 0, 1, 1], [], []>} : vector<8x128xf32>, vector<128x128xf32>, vector<8x128xf32> -> vector<8x128xf32>
    %48 = vector.broadcast %28 : vector<1x128xf32> to vector<8x128xf32>
    %49 = arith.addf %47, %48 : vector<8x128xf32>
    %50 = arith.addf %49, %22 : vector<8x128xf32>
    %cst_28 = arith.constant dense<0.000000e+00> : vector<8x128xf32>
    %51 = tpu.matmul %50, %25, %cst_28 {dimension_numbers = #tpu.dot_dimension_numbers<[1], [0], [0], [1], [0, 0, 1, 1], [], []>} : vector<8x128xf32>, vector<128x128xf32>, vector<8x128xf32> -> vector<8x128xf32>
    %52 = vector.broadcast %29 : vector<1x128xf32> to vector<8x128xf32>
    %53 = arith.addf %51, %52 : vector<8x128xf32>
    %cst_29 = arith.constant 5.000000e-01 : f32
    %54 = vector.broadcast %cst_29 : f32 to vector<8x128xf32>
    %55 = arith.mulf %54, %53 : vector<8x128xf32>
    %cst_30 = arith.constant 4.471500e-02 : f32
    %56 = vector.broadcast %cst_30 : f32 to vector<8x128xf32>
    %57 = arith.mulf %56, %53 : vector<8x128xf32>
    %58 = arith.mulf %57, %53 : vector<8x128xf32>
    %59 = arith.mulf %58, %53 : vector<8x128xf32>
    %60 = arith.addf %53, %59 : vector<8x128xf32>
    %cst_31 = arith.constant 0.797884583 : f32
    %61 = vector.broadcast %cst_31 : f32 to vector<8x128xf32>
    %62 = arith.mulf %61, %60 : vector<8x128xf32>
    %63 = math.tanh %62 : vector<8x128xf32>
    %cst_32 = arith.constant 1.000000e+00 : f32
    %64 = vector.broadcast %cst_32 : f32 to vector<8x128xf32>
    %65 = arith.addf %64, %63 : vector<8x128xf32>
    %66 = arith.mulf %55, %65 : vector<8x128xf32>
    %cst_33 = arith.constant dense<0.000000e+00> : vector<8x128xf32>
    %67 = tpu.matmul %66, %26, %cst_33 {dimension_numbers = #tpu.dot_dimension_numbers<[1], [0], [0], [1], [0, 0, 1, 1], [], []>} : vector<8x128xf32>, vector<128x128xf32>, vector<8x128xf32> -> vector<8x128xf32>
    %68 = vector.broadcast %30 : vector<1x128xf32> to vector<8x128xf32>
    %69 = arith.addf %67, %68 : vector<8x128xf32>
    %70 = tpu.iota {dimensions = array<i32: 1>} : vector<8x128xi32>
    %c32_i32 = arith.constant 32 : i32
    %71 = vector.broadcast %c32_i32 : i32 to vector<8x128xi32>
    %72 = arith.cmpi slt, %70, %71 : vector<8x128xi32>
    %cst_34 = arith.constant -1.000000e+30 : f32
    %73 = vector.broadcast %cst_34 : f32 to vector<8x128xf32>
    %74 = arith.select %72, %69, %73 : vector<8x128xi1>, vector<8x128xf32>
    %cst_35 = arith.constant dense<0xFF800000> : vector<8xf32>
    %75 = vector.multi_reduction <maximumf>, %74, %cst_35 [1] : vector<8x128xf32> to vector<8xf32>
    %76 = vector.shape_cast %75 : vector<8xf32> to vector<8x1xf32>
    %77 = vector.broadcast %76 : vector<8x1xf32> to vector<8x128xf32>
    %78 = arith.subf %74, %77 : vector<8x128xf32>
    %79 = math.exp %78 : vector<8x128xf32>
    %cst_36 = arith.constant dense<0.000000e+00> : vector<8xf32>
    %80 = vector.multi_reduction <add>, %79, %cst_36 [1] : vector<8x128xf32> to vector<8xf32>
    %81 = vector.shape_cast %80 : vector<8xf32> to vector<8x1xf32>
    %82 = vector.broadcast %81 : vector<8x1xf32> to vector<8x128xf32>
    %83 = arith.divf %79, %82 : vector<8x128xf32>
    %c0_37 = arith.constant 0 : index
    %c0_38 = arith.constant 0 : index
    %84 = vector.load %arg5[%c0_37, %c0_38] : memref<8x128xf32, #tpu.memory_space<vmem>>, vector<8x128xf32>
    tpu.vector_store %arg5[%c0_37, %c0_38], %83 {strides = array<i32>} : memref<8x128xf32, #tpu.memory_space<vmem>>, vector<8x128xf32>,
    return
  }
}

</mosaic_0001>

<llo_original>
// kernel: tpu_custom_call.1
$region0: #{tpu_custom_call.1}
  #allocation0 [shape = 'u32[]', space=smem, size = 0x4, offset = 0x4, fixed_abs, tag = 'smem constant byte address 0x4 - core index']
  #allocation1 [shape = 'u32[144,128]{1,0:T(1,128)}', space=vmem, size = 0x12000, scoped, tag = 'internal scratch']
  %s0 = inlined_call_operand.hbm [shape: f32[8,128], index: 0, kind: input, shape index: {}]
  %s1 = inlined_call_operand.hbm [shape: f32[20,128], index: 1, kind: input, shape index: {}]
  %s2 = inlined_call_operand.hbm [shape: f32[128,384], index: 2, kind: input, shape index: {}]
  %s3 = inlined_call_operand.hbm [shape: f32[128,512], index: 3, kind: input, shape index: {}]
  %s4 = inlined_call_operand.vmem [shape: f32[8,128], index: 4, kind: input, shape index: {}]
  %s5 = inlined_call_operand.hbm [shape: f32[8,128], index: 5, kind: output, shape index: {0}]
  %s6 = inlined_call_operand.hbm [shape: f32[8,8], index: 6, kind: output, shape index: {1}]
  %7 = xla_tuple %s5, %s6
  %s8 = sld [smem:[#allocation0]]
  $region54: #{tpu_custom_call.1} parent=0
    _
  %s10 = ssub.s32 1, %s8
  %s11 = scalar_select 0, %s10, %s8
  $region1: #{tpu_custom_call.1} parent=0
    #allocation2 [shape = 'u8[4096]{0}', space=vmem, size = 0x1000, scoped, tag = 'input window, operand 0, single buffered']
    #allocation3 [shape = 's32[1]{0}', space=sflag, size = 0x4, scoped, tag = 'scoped memory for tpu_custom_call.1']
    #allocation4 [shape = 's32[1]{0}', space=sflag, size = 0x4, scoped, tag = 'scoped memory for tpu_custom_call.1']
    #allocation5 [shape = 'u8[12288]{0}', space=vmem, size = 0x3000, scoped, tag = 'input window, operand 1, single buffered']
    #allocation6 [shape = 's32[1]{0}', space=sflag, size = 0x4, scoped, tag = 'scoped memory for tpu_custom_call.1']
    #allocation7 [shape = 'u8[196608]{0}', space=vmem, size = 0x30000, scoped, tag = 'input window, operand 2, single buffered']
    #allocation8 [shape = 'u8[262144]{0}', space=vmem, size = 0x40000, scoped, tag = 'input window, operand 3, single buffered']
    #allocation9 [shape = 's32[1]{0}', space=sflag, size = 0x4, scoped, tag = 'scoped memory for tpu_custom_call.1']
    #allocation10 [shape = 'u8[4096]{0}', space=vmem, size = 0x1000, scoped, tag = 'output window, operand 0, single buffered']
    #allocation11 [shape = 'u8[4096]{0}', space=vmem, size = 0x1000, scoped, tag = 'output window, operand 1, single buffered']
    #allocation12 [shape = 's32[1]{0}', space=sflag, size = 0x4, scoped, tag = 'scoped memory for tpu_custom_call.1']
    %12 = vsyncpa [#allocation3], 0
    %13 = vsyncpa [#allocation6], 0
    %14 = vsyncpa [#allocation9], 0
    %15 = vsyncpa [#allocation4], 0
    %16 = vsyncpa [#allocation12], 0
    // Predicated region
    $region2: #{tpu_custom_call.1} parent=1 // pred_check
      _
    $region3: #{tpu_custom_call.1} parent=1 // pred_check_branch
      %18 = sbr.rel (0) target = $region5
    $region4: #{tpu_custom_call.1} parent=1 // pred_region
      %s20 = ssub.s32 128, 128
      %21 = vsyncadd [#allocation3], %s20
      %s23 = sshll.u32 [#allocation2], 4
      %s24 = int_to_ptr.vmem [resolvable:$true] %s23
      %26 = dma.hbm_to_vmem [thread:$0]  %s0, 128, %s24, [#allocation3]
    $region5: #{tpu_custom_call.1} parent=1 // pred_fallthru
      _
    // Predicated region
    $region6: #{tpu_custom_call.1} parent=1 // pred_check
      _
    $region7: #{tpu_custom_call.1} parent=1 // pred_check_branch
      %28 = sbr.rel (0) target = $region9
    $region8: #{tpu_custom_call.1} parent=1 // pred_region
      %s30 = ssub.s32 384, 384
      %31 = vsyncadd [#allocation6], %s30
      %s32 = sshll.u32 [#allocation5], 4
      %s33 = int_to_ptr.vmem [resolvable:$true] %s32
      %38 = dma.hbm_to_vmem [thread:$0]  %s1, 384, %s33, [#allocation6], 128, 128, 8
    $region9: #{tpu_custom_call.1} parent=1 // pred_fallthru
      _
    // Predicated region
    $region10: #{tpu_custom_call.1} parent=1 // pred_check
      _
    $region11: #{tpu_custom_call.1} parent=1 // pred_check_branch
      %40 = sbr.rel (0) target = $region13
    $region12: #{tpu_custom_call.1} parent=1 // pred_region
      %s42 = ssub.s32 6144, 6144
      %43 = vsyncadd [#allocation6], %s42
      %s44 = sshll.u32 [#allocation7], 4
      %s45 = int_to_ptr.vmem [resolvable:$true] %s44
      %50 = dma.hbm_to_vmem [thread:$0]  %s2, 6144, %s45, [#allocation6], 384, 384, 24
    $region13: #{tpu_custom_call.1} parent=1 // pred_fallthru
      _
    // Predicated region
    $region14: #{tpu_custom_call.1} parent=1 // pred_check
      _
    $region15: #{tpu_custom_call.1} parent=1 // pred_check_branch
      %52 = sbr.rel (0) target = $region17
    $region16: #{tpu_custom_call.1} parent=1 // pred_region
      %s54 = ssub.s32 8192, 8192
      %55 = vsyncadd [#allocation9], %s54
      %s56 = sshll.u32 [#allocation8], 4
      %s57 = int_to_ptr.vmem [resolvable:$true] %s56
      %62 = dma.hbm_to_vmem [thread:$0]  %s3, 8192, %s57, [#allocation9], 512, 512, 32
    $region17: #{tpu_custom_call.1} parent=1 // pred_fallthru
      _
    // Predicated region
    $region18: #{tpu_custom_call.1} parent=1 // pred_check
      _
    $region19: #{tpu_custom_call.1} parent=1 // pred_check_branch
      %64 = sbr.rel (0) target = $region21
    $region20: #{tpu_custom_call.1} parent=1 // pred_region
      _
    $region21: #{tpu_custom_call.1} parent=1 // pred_fallthru
      _
    // Predicated region
    $region22: #{tpu_custom_call.1} parent=1 // pred_check
      _
    $region23: #{tpu_custom_call.1} parent=1 // pred_check_branch
      %66 = sbr.rel (0) target = $region25
    $region24: #{tpu_custom_call.1} parent=1 // pred_region
      %67 = dma.done [#allocation3], 128
    $region25: #{tpu_custom_call.1} parent=1 // pred_fallthru
      _
    // Predicated region
    $region26: #{tpu_custom_call.1} parent=1 // pred_check
      _
    $region27: #{tpu_custom_call.1} parent=1 // pred_check_branch
      %69 = sbr.rel (0) target = $region29
    $region28: #{tpu_custom_call.1} parent=1 // pred_region
      %70 = dma.done [#allocation6], 384
    $region29: #{tpu_custom_call.1} parent=1 // pred_fallthru
      _
    // Predicated region
    $region30: #{tpu_custom_call.1} parent=1 // pred_check
      _
    $region31: #{tpu_custom_call.1} parent=1 // pred_check_branch
      %72 = sbr.rel (0) target = $region33
    $region32: #{tpu_custom_call.1} parent=1 // pred_region
      %73 = dma.done [#allocation6], 6144
    $region33: #{tpu_custom_call.1} parent=1 // pred_fallthru
      _
    // Predicated region
    $region34: #{tpu_custom_call.1} parent=1 // pred_check
      _
    $region35: #{tpu_custom_call.1} parent=1 // pred_check_branch
      %75 = sbr.rel (0) target = $region37
    $region36: #{tpu_custom_call.1} parent=1 // pred_region
      %76 = dma.done [#allocation9], 8192
    $region37: #{tpu_custom_call.1} parent=1 // pred_fallthru
      _
    %v77 = vld [vmem:[#allocation2] sm:$0xff]
    %v78 = vmul.f32 %v77, 2.0
    %v79 = vld [vmem:[#allocation5] sm:$0xff]
    %v80 = vadd.f32 %v78, %v79
    %v81 = vld [vmem:[#allocation7] sm:$0xff]
    %v82 = vld [vmem:[#allocation7 + $0x8] sm:$0xff]
    %v83 = vld [vmem:[#allocation7 + $0x10] sm:$0xff]
    %v84 = vld [vmem:[#allocation7 + $0x18] sm:$0xff]
    %v85 = vld [vmem:[#allocation7 + $0x20] sm:$0xff]
    %v86 = vld [vmem:[#allocation7 + $0x28] sm:$0xff]
    %v87 = vld [vmem:[#allocation7 + $0x30] sm:$0xff]
    %v88 = vld [vmem:[#allocation7 + $0x38] sm:$0xff]
    %v89 = vld [vmem:[#allocation7 + $0x40] sm:$0xff]
    %v90 = vld [vmem:[#allocation7 + $0x48] sm:$0xff]
    %v91 = vld [vmem:[#allocation7 + $0x50] sm:$0xff]
    %v92 = vld [vmem:[#allocation7 + $0x58] sm:$0xff]
    %v93 = vld [vmem:[#allocation7 + $0x60] sm:$0xff]
    %v94 = vld [vmem:[#allocation7 + $0x68] sm:$0xff]
    %v95 = vld [vmem:[#allocation7 + $0x70] sm:$0xff]
    %v96 = vld [vmem:[#allocation7 + $0x78] sm:$0xff]
    %v97 = vld [vmem:[#allocation7 + $0x80] sm:$0xff]
    %v98 = vld [vmem:[#allocation7 + $0x88] sm:$0xff]
    %v99 = vld [vmem:[#allocation7 + $0x90] sm:$0xff]
    %v100 = vld [vmem:[#allocation7 + $0x98] sm:$0xff]
    %v101 = vld [vmem:[#allocation7 + $0xa0] sm:$0xff]
    %v102 = vld [vmem:[#allocation7 + $0xa8] sm:$0xff]
    %v103 = vld [vmem:[#allocation7 + $0xb0] sm:$0xff]
    %v104 = vld [vmem:[#allocation7 + $0xb8] sm:$0xff]
    %v105 = vld [vmem:[#allocation7 + $0xc0] sm:$0xff]
    %v106 = vld [vmem:[#allocation7 + $0xc8] sm:$0xff]
    %v107 = vld [vmem:[#allocation7 + $0xd0] sm:$0xff]
    %v108 = vld [vmem:[#allocation7 + $0xd8] sm:$0xff]
    %v109 = vld [vmem:[#allocation7 + $0xe0] sm:$0xff]
    %v110 = vld [vmem:[#allocation7 + $0xe8] sm:$0xff]
    %v111 = vld [vmem:[#allocation7 + $0xf0] sm:$0xff]
    %v112 = vld [vmem:[#allocation7 + $0xf8] sm:$0xff]
    %v113 = vld [vmem:[#allocation7 + $0x100] sm:$0xff]
    %v114 = vld [vmem:[#allocation7 + $0x108] sm:$0xff]
    %v115 = vld [vmem:[#allocation7 + $0x110] sm:$0xff]
    %v116 = vld [vmem:[#allocation7 + $0x118] sm:$0xff]
    %v117 = vld [vmem:[#allocation7 + $0x120] sm:$0xff]
    %v118 = vld [vmem:[#allocation7 + $0x128] sm:$0xff]
    %v119 = vld [vmem:[#allocation7 + $0x130] sm:$0xff]
    %v120 = vld [vmem:[#allocation7 + $0x138] sm:$0xff]
    %v121 = vld [vmem:[#allocation7 + $0x140] sm:$0xff]
    %v122 = vld [vmem:[#allocation7 + $0x148] sm:$0xff]
    %v123 = vld [vmem:[#allocation7 + $0x150] sm:$0xff]
    %v124 = vld [vmem:[#allocation7 + $0x158] sm:$0xff]
    %v125 = vld [vmem:[#allocation7 + $0x160] sm:$0xff]
    %v126 = vld [vmem:[#allocation7 + $0x168] sm:$0xff]
    %v127 = vld [vmem:[#allocation7 + $0x170] sm:$0xff]
    %v128 = vld [vmem:[#allocation7 + $0x178] sm:$0xff]
    %129 = vmatprep.subr.mxu0 %v82
    %130 = vmatpush1.msra.mxu0 %v81
    %131 = vmatprep.subr.mxu0 %v85
    %132 = vmatpush1.msra.mxu0 %v84
    %133 = vmatprep.subr.mxu0 %v88
    %134 = vmatpush1.msra.mxu0 %v87
    %135 = vmatprep.subr.mxu0 %v91
    %136 = vmatpush1.msra.mxu0 %v90
    %137 = vmatprep.subr.mxu0 %v94
    %138 = vmatpush1.msra.mxu0 %v93
    %139 = vmatprep.subr.mxu0 %v97
    %140 = vmatpush1.msra.mxu0 %v96
    %141 = vmatprep.subr.mxu0 %v100
    %142 = vmatpush1.msra.mxu0 %v99
    %143 = vmatprep.subr.mxu0 %v103
    %144 = vmatpush1.msra.mxu0 %v102
    %145 = vmatprep.subr.mxu0 %v106
    %146 = vmatpush1.msra.mxu0 %v105
    %147 = vmatprep.subr.mxu0 %v109
    %148 = vmatpush1.msra.mxu0 %v108
    %149 = vmatprep.subr.mxu0 %v112
    %150 = vmatpush1.msra.mxu0 %v111
    %151 = vmatprep.subr.mxu0 %v115
    %152 = vmatpush1.msra.mxu0 %v114
    %153 = vmatprep.subr.mxu0 %v118
    %154 = vmatpush1.msra.mxu0 %v117
    %155 = vmatprep.subr.mxu0 %v121
    %156 = vmatpush1.msra.mxu0 %v120
    %157 = vmatprep.subr.mxu0 %v124
    %158 = vmatpush1.msra.mxu0 %v123
    %159 = vmatprep.subr.mxu0 %v127
    %160 = vmatpush1.msra.mxu0 %v126
    %161 = vmatprep.subr.mxu0 0.0
    %162 = vmatpush1.msra.mxu0 0.0
    %163 = vmatprep.subr.mxu0 0.0
    %164 = vmatpush1.msra.mxu0 0.0
    %165 = vmatprep.subr.mxu0 0.0
    %166 = vmatpush1.msra.mxu0 0.0
    %167 = vmatprep.subr.mxu0 0.0
    %168 = vmatpush1.msra.mxu0 0.0
    %169 = vmatprep.subr.mxu0 0.0
    %170 = vmatpush1.msra.mxu0 0.0
    %171 = vmatprep.subr.mxu0 0.0
    %172 = vmatpush1.msra.mxu0 0.0
    %173 = vmatprep.subr.mxu0 0.0
    %174 = vmatpush1.msra.mxu0 0.0
    %175 = vmatprep.subr.mxu0 0.0
    %176 = vmatpush1.msra.mxu0 0.0
    %177 = vmatprep.subr.mxu0 0.0
    %178 = vmatpush1.msra.mxu0 0.0
    %179 = vmatprep.subr.mxu0 0.0
    %180 = vmatpush1.msra.mxu0 0.0
    %181 = vmatprep.subr.mxu0 0.0
    %182 = vmatpush1.msra.mxu0 0.0
    %183 = vmatprep.subr.mxu0 0.0
    %184 = vmatpush1.msra.mxu0 0.0
    %185 = vmatprep.subr.mxu0 0.0
    %186 = vmatpush1.msra.mxu0 0.0
    %187 = vmatprep.subr.mxu0 0.0
    %188 = vmatpush1.msra.mxu0 0.0
    %189 = vmatprep.subr.mxu0 0.0
    %190 = vmatpush1.msra.mxu0 0.0
    %191 = vmatprep.subr.mxu0 0.0
    %192 = vmatpush1.msra.mxu0 0.0
    %193 = vmatprep.mubr.f32.mxu0 0.0
    %194 = vmatmul.mubr.f32.gmra.mrb[0].mxu0 %v80
    %v195 = vpop.f32.mrb[0].mxu0
    %v196 = vadd.f32 0.0, %v195
    %v197 = vpop.f32.mrb[0].mxu0
    %v198 = vadd.f32 0.0, %v197
    %199 = vdwg.mxu0
    %200 = vmatprep.subr.mxu0 0.0
    %201 = vmatpush1.msra.mxu0 %v83
    %202 = vmatprep.subr.mxu0 0.0
    %203 = vmatpush1.msra.mxu0 %v86
    %204 = vmatprep.subr.mxu0 0.0
    %205 = vmatpush1.msra.mxu0 %v89
    %206 = vmatprep.subr.mxu0 0.0
    %207 = vmatpush1.msra.mxu0 %v92
    %208 = vmatprep.subr.mxu0 0.0
    %209 = vmatpush1.msra.mxu0 %v95
    %210 = vmatprep.subr.mxu0 0.0
    %211 = vmatpush1.msra.mxu0 %v98
    %212 = vmatprep.subr.mxu0 0.0
    %213 = vmatpush1.msra.mxu0 %v101
    %214 = vmatprep.subr.mxu0 0.0
    %215 = vmatpush1.msra.mxu0 %v104
    %216 = vmatprep.subr.mxu0 0.0
    %217 = vmatpush1.msra.mxu0 %v107
    %218 = vmatprep.subr.mxu0 0.0
    %219 = vmatpush1.msra.mxu0 %v110
    %220 = vmatprep.subr.mxu0 0.0
    %221 = vmatpush1.msra.mxu0 %v113
    %222 = vmatprep.subr.mxu0 0.0
    %223 = vmatpush1.msra.mxu0 %v116
    %224 = vmatprep.subr.mxu0 0.0
    %225 = vmatpush1.msra.mxu0 %v119
    %226 = vmatprep.subr.mxu0 0.0
    %227 = vmatpush1.msra.mxu0 %v122
    %228 = vmatprep.subr.mxu0 0.0
    %229 = vmatpush1.msra.mxu0 %v125
    %230 = vmatprep.subr.mxu0 0.0
    %231 = vmatpush1.msra.mxu0 %v128
    %232 = vmatprep.subr.mxu0 0.0
    %233 = vmatpush1.msra.mxu0 0.0
    %234 = vmatprep.subr.mxu0 0.0
    %235 = vmatpush1.msra.mxu0 0.0
    %236 = vmatprep.subr.mxu0 0.0
    %237 = vmatpush1.msra.mxu0 0.0
    %238 = vmatprep.subr.mxu0 0.0
    %239 = vmatpush1.msra.mxu0 0.0
    %240 = vmatprep.subr.mxu0 0.0
    %241 = vmatpush1.msra.mxu0 0.0
    %242 = vmatprep.subr.mxu0 0.0
    %243 = vmatpush1.msra.mxu0 0.0
    %244 = vmatprep.subr.mxu0 0.0
    %245 = vmatpush1.msra.mxu0 0.0
    %246 = vmatprep.subr.mxu0 0.0
    %247 = vmatpush1.msra.mxu0 0.0
    %248 = vmatprep.subr.mxu0 0.0
    %249 = vmatpush1.msra.mxu0 0.0
    %250 = vmatprep.subr.mxu0 0.0
    %251 = vmatpush1.msra.mxu0 0.0
    %252 = vmatprep.subr.mxu0 0.0
    %253 = vmatpush1.msra.mxu0 0.0
    %254 = vmatprep.subr.mxu0 0.0
    %255 = vmatpush1.msra.mxu0 0.0
    %256 = vmatprep.subr.mxu0 0.0
    %257 = vmatpush1.msra.mxu0 0.0
    %258 = vmatprep.subr.mxu0 0.0
    %259 = vmatpush1.msra.mxu0 0.0
    %260 = vmatprep.subr.mxu0 0.0
    %261 = vmatpush1.msra.mxu0 0.0
    %262 = vmatprep.subr.mxu0 0.0
    %263 = vmatpush1.msra.mxu0 0.0
    %264 = vmatprep.mubr.f32.mxu0 0.0
    %265 = vmatmul.mubr.f32.gmra.mrb[0].mxu0 %v80
    %v266 = vpop.f32.mrb[0].mxu0
    %v267 = vadd.f32 0.0, %v266
    %v268 = vpop.f32.mrb[0].mxu0
    %269 = vdwg.mxu0
    %270 = vmatprep.subr.mxu0 0.0
    %271 = vmatpush1.xpose.msra.mxu0 %v198
    %272 = vmatprep.subr.mxu0 0.0
    %273 = vmatpush1.xpose.msra.mxu0 0.0
    %274 = vmatprep.subr.mxu0 0.0
    %275 = vmatpush1.xpose.msra.mxu0 0.0
    %276 = vmatprep.subr.mxu0 0.0
    %277 = vmatpush1.xpose.msra.mxu0 0.0
    %278 = vmatprep.subr.mxu0 0.0
    %279 = vmatpush1.xpose.msra.mxu0 0.0
    %280 = vmatprep.subr.mxu0 0.0
    %281 = vmatpush1.xpose.msra.mxu0 0.0
    %282 = vmatprep.subr.mxu0 0.0
    %283 = vmatpush1.xpose.msra.mxu0 0.0
    %284 = vmatprep.subr.mxu0 0.0
    %285 = vmatpush1.xpose.msra.mxu0 0.0
    %286 = vmatprep.subr.mxu0 0.0
    %287 = vmatpush1.xpose.msra.mxu0 0.0
    %288 = vmatprep.subr.mxu0 0.0
    %289 = vmatpush1.xpose.msra.mxu0 0.0
    %290 = vmatprep.subr.mxu0 0.0
    %291 = vmatpush1.xpose.msra.mxu0 0.0
    %292 = vmatprep.subr.mxu0 0.0
    %293 = vmatpush1.xpose.msra.mxu0 0.0
    %294 = vmatprep.subr.mxu0 0.0
    %295 = vmatpush1.xpose.msra.mxu0 0.0
    %296 = vmatprep.subr.mxu0 0.0
    %297 = vmatpush1.xpose.msra.mxu0 0.0
    %298 = vmatprep.subr.mxu0 0.0
    %299 = vmatpush1.xpose.msra.mxu0 0.0
    %300 = vmatprep.subr.mxu0 0.0
    %301 = vmatpush1.xpose.msra.mxu0 0.0
    %302 = vmatprep.subr.mxu0 0.0
    %303 = vmatpush1.xpose.msra.mxu0 0.0
    %304 = vmatprep.subr.mxu0 0.0
    %305 = vmatpush1.xpose.msra.mxu0 0.0
    %306 = vmatprep.subr.mxu0 0.0
    %307 = vmatpush1.xpose.msra.mxu0 0.0
    %308 = vmatprep.subr.mxu0 0.0
    %309 = vmatpush1.xpose.msra.mxu0 0.0
    %310 = vmatprep.subr.mxu0 0.0
    %311 = vmatpush1.xpose.msra.mxu0 0.0
    %312 = vmatprep.subr.mxu0 0.0
    %313 = vmatpush1.xpose.msra.mxu0 0.0
    %314 = vmatprep.subr.mxu0 0.0
    %315 = vmatpush1.xpose.msra.mxu0 0.0
    %316 = vmatprep.subr.mxu0 0.0
    %317 = vmatpush1.xpose.msra.mxu0 0.0
    %318 = vmatprep.subr.mxu0 0.0
    %319 = vmatpush1.xpose.msra.mxu0 0.0
    %320 = vmatprep.subr.mxu0 0.0
    %321 = vmatpush1.xpose.msra.mxu0 0.0
    %322 = vmatprep.subr.mxu0 0.0
    %323 = vmatpush1.xpose.msra.mxu0 0.0
    %324 = vmatprep.subr.mxu0 0.0
    %325 = vmatpush1.xpose.msra.mxu0 0.0
    %326 = vmatprep.subr.mxu0 0.0
    %327 = vmatpush1.xpose.msra.mxu0 0.0
    %328 = vmatprep.subr.mxu0 0.0
    %329 = vmatpush1.xpose.msra.mxu0 0.0
    %330 = vmatprep.subr.mxu0 0.0
    %331 = vmatpush1.xpose.msra.mxu0 0.0
    %332 = vmatprep.subr.mxu0 0.0
    %333 = vmatpush1.xpose.msra.mxu0 0.0
    %334 = vmatprep.mubr.f32.mxu0 0.0
    %335 = vmatmul.mubr.f32.gmra.mrb[0].mxu0 %v196
    %v336 = vpop.f32.mrb[0].mxu0
    %v337 = vadd.f32 0.0, %v336
    %v338 = vpop.f32.mrb[0].mxu0
    %339 = vdwg.mxu0
    %vm340 = vcmask 64512
    %v341 = vsel %vm340, %v337, -inf
    %342 = vmax.xlane.f32.xlu0 %v341
    %v343 = vpop.xlane.xlu0 %342
    %v344 = vsub.f32 %v337, %v343
    %v345 = vmul.f32 %v344, 1.442695
    %v346 = vpow.pop %v345
    %v347 = vsel %vm340, %v346, 0.0
    %348 = vadd.xlane.f32.xlu0 %v347
    %v349 = vpop.xlane.xlu0 %348
    %v350 = vrcp.pop %v349
    %v351 = vmul.f32 %v346, %v350
    %352 = vst.msk [vmem:[#allocation11] sm:$0xff] %vm340, %v351
    %v354 = vsel %vm340, %v351, 0
    %356 = vmatprep.subr.mxu0 0.0
    %357 = vmatpush1.msra.mxu0 %v267
    %358 = vmatprep.subr.mxu0 0.0
    %359 = vmatpush1.msra.mxu0 0.0
    %360 = vmatprep.subr.mxu0 0.0
    %361 = vmatpush1.msra.mxu0 0.0
    %362 = vmatprep.subr.mxu0 0.0
    %363 = vmatpush1.msra.mxu0 0.0
    %364 = vmatprep.subr.mxu0 0.0
    %365 = vmatpush1.msra.mxu0 0.0
    %366 = vmatprep.subr.mxu0 0.0
    %367 = vmatpush1.msra.mxu0 0.0
    %368 = vmatprep.subr.mxu0 0.0
    %369 = vmatpush1.msra.mxu0 0.0
    %370 = vmatprep.subr.mxu0 0.0
    %371 = vmatpush1.msra.mxu0 0.0
    %372 = vmatprep.subr.mxu0 0.0
    %373 = vmatpush1.msra.mxu0 0.0
    %374 = vmatprep.subr.mxu0 0.0
    %375 = vmatpush1.msra.mxu0 0.0
    %376 = vmatprep.subr.mxu0 0.0
    %377 = vmatpush1.msra.mxu0 0.0
    %378 = vmatprep.subr.mxu0 0.0
    %379 = vmatpush1.msra.mxu0 0.0
    %380 = vmatprep.subr.mxu0 0.0
    %381 = vmatpush1.msra.mxu0 0.0
    %382 = vmatprep.subr.mxu0 0.0
    %383 = vmatpush1.msra.mxu0 0.0
    %384 = vmatprep.subr.mxu0 0.0
    %385 = vmatpush1.msra.mxu0 0.0
    %386 = vmatprep.subr.mxu0 0.0
    %387 = vmatpush1.msra.mxu0 0.0
    %388 = vmatprep.subr.mxu0 0.0
    %389 = vmatpush1.msra.mxu0 0.0
    %390 = vmatprep.subr.mxu0 0.0
    %391 = vmatpush1.msra.mxu0 0.0
    %392 = vmatprep.subr.mxu0 0.0
    %393 = vmatpush1.msra.mxu0 0.0
    %394 = vmatprep.subr.mxu0 0.0
    %395 = vmatpush1.msra.mxu0 0.0
    %396 = vmatprep.subr.mxu0 0.0
    %397 = vmatpush1.msra.mxu0 0.0
    %398 = vmatprep.subr.mxu0 0.0
    %399 = vmatpush1.msra.mxu0 0.0
    %400 = vmatprep.subr.mxu0 0.0
    %401 = vmatpush1.msra.mxu0 0.0
    %402 = vmatprep.subr.mxu0 0.0
    %403 = vmatpush1.msra.mxu0 0.0
    %404 = vmatprep.subr.mxu0 0.0
    %405 = vmatpush1.msra.mxu0 0.0
    %406 = vmatprep.subr.mxu0 0.0
    %407 = vmatpush1.msra.mxu0 0.0
    %408 = vmatprep.subr.mxu0 0.0
    %409 = vmatpush1.msra.mxu0 0.0
    %410 = vmatprep.subr.mxu0 0.0
    %411 = vmatpush1.msra.mxu0 0.0
    %412 = vmatprep.subr.mxu0 0.0
    %413 = vmatpush1.msra.mxu0 0.0
    %414 = vmatprep.subr.mxu0 0.0
    %415 = vmatpush1.msra.mxu0 0.0
    %416 = vmatprep.subr.mxu0 0.0
    %417 = vmatpush1.msra.mxu0 0.0
    %418 = vmatprep.subr.mxu0 0.0
    %419 = vmatpush1.msra.mxu0 0.0
    %420 = vmatprep.mubr.f32.mxu0 0.0
    %421 = vmatmul.mubr.f32.gmra.mrb[0].mxu0 %v354
    %v422 = vpop.f32.mrb[0].mxu0
    %v423 = vadd.f32 %v80, %v422
    %v424 = vpop.f32.mrb[0].mxu0
    %425 = vdwg.mxu0
    %v426 = vld [vmem:[#allocation8] sm:$0xff]
    %v427 = vld [vmem:[#allocation8 + $0x20] sm:$0xff]
    %v428 = vld [vmem:[#allocation8 + $0x40] sm:$0xff]
    %v429 = vld [vmem:[#allocation8 + $0x60] sm:$0xff]
    %v430 = vld [vmem:[#allocation8 + $0x80] sm:$0xff]
    %v431 = vld [vmem:[#allocation8 + $0xa0] sm:$0xff]
    %v432 = vld [vmem:[#allocation8 + $0xc0] sm:$0xff]
    %v433 = vld [vmem:[#allocation8 + $0xe0] sm:$0xff]
    %v434 = vld [vmem:[#allocation8 + $0x100] sm:$0xff]
    %v435 = vld [vmem:[#allocation8 + $0x120] sm:$0xff]
    %v436 = vld [vmem:[#allocation8 + $0x140] sm:$0xff]
    %v437 = vld [vmem:[#allocation8 + $0x160] sm:$0xff]
    %v438 = vld [vmem:[#allocation8 + $0x180] sm:$0xff]
    %v439 = vld [vmem:[#allocation8 + $0x1a0] sm:$0xff]
    %v440 = vld [vmem:[#allocation8 + $0x1c0] sm:$0xff]
    %v441 = vld [vmem:[#allocation8 + $0x1e0] sm:$0xff]
    %v442 = vld [vmem:[#allocation8 + $0x8] sm:$0xff]
    %v443 = vld [vmem:[#allocation8 + $0x28] sm:$0xff]
    %v444 = vld [vmem:[#allocation8 + $0x48] sm:$0xff]
    %v445 = vld [vmem:[#allocation8 + $0x68] sm:$0xff]
    %v446 = vld [vmem:[#allocation8 + $0x88] sm:$0xff]
    %v447 = vld [vmem:[#allocation8 + $0xa8] sm:$0xff]
    %v448 = vld [vmem:[#allocation8 + $0xc8] sm:$0xff]
    %v449 = vld [vmem:[#allocation8 + $0xe8] sm:$0xff]
    %v450 = vld [vmem:[#allocation8 + $0x108] sm:$0xff]
    %v451 = vld [vmem:[#allocation8 + $0x128] sm:$0xff]
    %v452 = vld [vmem:[#allocation8 + $0x148] sm:$0xff]
    %v453 = vld [vmem:[#allocation8 + $0x168] sm:$0xff]
    %v454 = vld [vmem:[#allocation8 + $0x188] sm:$0xff]
    %v455 = vld [vmem:[#allocation8 + $0x1a8] sm:$0xff]
    %v456 = vld [vmem:[#allocation8 + $0x1c8] sm:$0xff]
    %v457 = vld [vmem:[#allocation8 + $0x1e8] sm:$0xff]
    %v458 = vld [vmem:[#allocation8 + $0x10] sm:$0xff]
    %v459 = vld [vmem:[#allocation8 + $0x30] sm:$0xff]
    %v460 = vld [vmem:[#allocation8 + $0x50] sm:$0xff]
    %v461 = vld [vmem:[#allocation8 + $0x70] sm:$0xff]
    %v462 = vld [vmem:[#allocation8 + $0x90] sm:$0xff]
    %v463 = vld [vmem:[#allocation8 + $0xb0] sm:$0xff]
    %v464 = vld [vmem:[#allocation8 + $0xd0] sm:$0xff]
    %v465 = vld [vmem:[#allocation8 + $0xf0] sm:$0xff]
    %v466 = vld [vmem:[#allocation8 + $0x110] sm:$0xff]
    %v467 = vld [vmem:[#allocation8 + $0x130] sm:$0xff]
    %v468 = vld [vmem:[#allocation8 + $0x150] sm:$0xff]
    %v469 = vld [vmem:[#allocation8 + $0x170] sm:$0xff]
    %v470 = vld [vmem:[#allocation8 + $0x190] sm:$0xff]
    %v471 = vld [vmem:[#allocation8 + $0x1b0] sm:$0xff]
    %v472 = vld [vmem:[#allocation8 + $0x1d0] sm:$0xff]
    %v473 = vld [vmem:[#allocation8 + $0x1f0] sm:$0xff]
    %v474 = vld [vmem:[#allocation8 + $0x18] sm:$0xff]
    %v475 = vld [vmem:[#allocation8 + $0x38] sm:$0xff]
    %v476 = vld [vmem:[#allocation8 + $0x58] sm:$0xff]
    %v477 = vld [vmem:[#allocation8 + $0x78] sm:$0xff]
    %v478 = vld [vmem:[#allocation8 + $0x98] sm:$0xff]
    %v479 = vld [vmem:[#allocation8 + $0xb8] sm:$0xff]
    %v480 = vld [vmem:[#allocation8 + $0xd8] sm:$0xff]
    %v481 = vld [vmem:[#allocation8 + $0xf8] sm:$0xff]
    %v482 = vld [vmem:[#allocation8 + $0x118] sm:$0xff]
    %v483 = vld [vmem:[#allocation8 + $0x138] sm:$0xff]
    %v484 = vld [vmem:[#allocation8 + $0x158] sm:$0xff]
    %v485 = vld [vmem:[#allocation8 + $0x178] sm:$0xff]
    %v486 = vld [vmem:[#allocation8 + $0x198] sm:$0xff]
    %v487 = vld [vmem:[#allocation8 + $0x1b8] sm:$0xff]
    %v488 = vld [vmem:[#allocation8 + $0x1d8] sm:$0xff]
    %v489 = vld [vmem:[#allocation8 + $0x1f8] sm:$0xff]
    %v490 = vld [vmem:[%s4] sm:$0x1]
    %v491 = vld [vmem:[%s4 + $0x1] sm:$0x1]
    %v492 = vld [vmem:[%s4 + $0x2] sm:$0x1]
    %v493 = vld [vmem:[%s4 + $0x3] sm:$0x1]
    %v494 = vlaneseq
    %v495 = vshrl.u32 %v494, 7
    %v496 = vsub.s32 0, %v495
    %v497 = vrot.slane %v490, %v496
    %498 = vmatprep.subr.mxu0 0.0
    %499 = vmatpush1.msra.mxu0 %v426
    %500 = vmatprep.subr.mxu0 0.0
    %501 = vmatpush1.msra.mxu0 %v427
    %502 = vmatprep.subr.mxu0 0.0
    %503 = vmatpush1.msra.mxu0 %v428
    %504 = vmatprep.subr.mxu0 0.0
    %505 = vmatpush1.msra.mxu0 %v429
    %506 = vmatprep.subr.mxu0 0.0
    %507 = vmatpush1.msra.mxu0 %v430
    %508 = vmatprep.subr.mxu0 0.0
    %509 = vmatpush1.msra.mxu0 %v431
    %510 = vmatprep.subr.mxu0 0.0
    %511 = vmatpush1.msra.mxu0 %v432
    %512 = vmatprep.subr.mxu0 0.0
    %513 = vmatpush1.msra.mxu0 %v433
    %514 = vmatprep.subr.mxu0 0.0
    %515 = vmatpush1.msra.mxu0 %v434
    %516 = vmatprep.subr.mxu0 0.0
    %517 = vmatpush1.msra.mxu0 %v435
    %518 = vmatprep.subr.mxu0 0.0
    %519 = vmatpush1.msra.mxu0 %v436
    %520 = vmatprep.subr.mxu0 0.0
    %521 = vmatpush1.msra.mxu0 %v437
    %522 = vmatprep.subr.mxu0 0.0
    %523 = vmatpush1.msra.mxu0 %v438
    %524 = vmatprep.subr.mxu0 0.0
    %525 = vmatpush1.msra.mxu0 %v439
    %526 = vmatprep.subr.mxu0 0.0
    %527 = vmatpush1.msra.mxu0 %v440
    %528 = vmatprep.subr.mxu0 0.0
    %529 = vmatpush1.msra.mxu0 %v441
    %530 = vmatprep.subr.mxu0 0.0
    %531 = vmatpush1.msra.mxu0 0.0
    %532 = vmatprep.subr.mxu0 0.0
    %533 = vmatpush1.msra.mxu0 0.0
    %534 = vmatprep.subr.mxu0 0.0
    %535 = vmatpush1.msra.mxu0 0.0
    %536 = vmatprep.subr.mxu0 0.0
    %537 = vmatpush1.msra.mxu0 0.0
    %538 = vmatprep.subr.mxu0 0.0
    %539 = vmatpush1.msra.mxu0 0.0
    %540 = vmatprep.subr.mxu0 0.0
    %541 = vmatpush1.msra.mxu0 0.0
    %542 = vmatprep.subr.mxu0 0.0
    %543 = vmatpush1.msra.mxu0 0.0
    %544 = vmatprep.subr.mxu0 0.0
    %545 = vmatpush1.msra.mxu0 0.0
    %546 = vmatprep.subr.mxu0 0.0
    %547 = vmatpush1.msra.mxu0 0.0
    %548 = vmatprep.subr.mxu0 0.0
    %549 = vmatpush1.msra.mxu0 0.0
    %550 = vmatprep.subr.mxu0 0.0
    %551 = vmatpush1.msra.mxu0 0.0
    %552 = vmatprep.subr.mxu0 0.0
    %553 = vmatpush1.msra.mxu0 0.0
    %554 = vmatprep.subr.mxu0 0.0
    %555 = vmatpush1.msra.mxu0 0.0
    %556 = vmatprep.subr.mxu0 0.0
    %557 = vmatpush1.msra.mxu0 0.0
    %558 = vmatprep.subr.mxu0 0.0
    %559 = vmatpush1.msra.mxu0 0.0
    %560 = vmatprep.subr.mxu0 0.0
    %561 = vmatpush1.msra.mxu0 0.0
    %562 = vmatprep.mubr.f32.mxu0 0.0
    %563 = vmatmul.mubr.f32.gmra.mrb[0].mxu0 %v423
    %v564 = vpop.f32.mrb[0].mxu0
    %v565 = vadd.f32 %v497, %v564
    %v566 = vpop.f32.mrb[0].mxu0
    %567 = vdwg.mxu0
    %v568 = vmul.f32 %v565, 0.5
    %v569 = vmul.f32 %v565, 0.044715
    %v570 = vmul.f32 %v569, %v565
    %v571 = vmul.f32 %v570, %v565
    %v572 = vadd.f32 %v565, %v571
    %v573 = vmul.f32 %v572, 0.7978846
    %v574 = vtanh.pop %v573
    %v575 = vadd.f32 %v574, 1.0
    %v576 = vmul.f32 %v568, %v575
    %v577 = vlaneseq
    %v578 = vshrl.u32 %v577, 7
    %v579 = vsub.s32 0, %v578
    %v580 = vrot.slane %v491, %v579
    %581 = vmatprep.subr.mxu0 0.0
    %582 = vmatpush1.msra.mxu0 %v442
    %583 = vmatprep.subr.mxu0 0.0
    %584 = vmatpush1.msra.mxu0 %v443
    %585 = vmatprep.subr.mxu0 0.0
    %586 = vmatpush1.msra.mxu0 %v444
    %587 = vmatprep.subr.mxu0 0.0
    %588 = vmatpush1.msra.mxu0 %v445
    %589 = vmatprep.subr.mxu0 0.0
    %590 = vmatpush1.msra.mxu0 %v446
    %591 = vmatprep.subr.mxu0 0.0
    %592 = vmatpush1.msra.mxu0 %v447
    %593 = vmatprep.subr.mxu0 0.0
    %594 = vmatpush1.msra.mxu0 %v448
    %595 = vmatprep.subr.mxu0 0.0
    %596 = vmatpush1.msra.mxu0 %v449
    %597 = vmatprep.subr.mxu0 0.0
    %598 = vmatpush1.msra.mxu0 %v450
    %599 = vmatprep.subr.mxu0 0.0
    %600 = vmatpush1.msra.mxu0 %v451
    %601 = vmatprep.subr.mxu0 0.0
    %602 = vmatpush1.msra.mxu0 %v452
    %603 = vmatprep.subr.mxu0 0.0
    %604 = vmatpush1.msra.mxu0 %v453
    %605 = vmatprep.subr.mxu0 0.0
    %606 = vmatpush1.msra.mxu0 %v454
    %607 = vmatprep.subr.mxu0 0.0
    %608 = vmatpush1.msra.mxu0 %v455
    %609 = vmatprep.subr.mxu0 0.0
    %610 = vmatpush1.msra.mxu0 %v456
    %611 = vmatprep.subr.mxu0 0.0
    %612 = vmatpush1.msra.mxu0 %v457
    %613 = vmatprep.subr.mxu0 0.0
    %614 = vmatpush1.msra.mxu0 0.0
    %615 = vmatprep.subr.mxu0 0.0
    %616 = vmatpush1.msra.mxu0 0.0
    %617 = vmatprep.subr.mxu0 0.0
    %618 = vmatpush1.msra.mxu0 0.0
    %619 = vmatprep.subr.mxu0 0.0
    %620 = vmatpush1.msra.mxu0 0.0
    %621 = vmatprep.subr.mxu0 0.0
    %622 = vmatpush1.msra.mxu0 0.0
    %623 = vmatprep.subr.mxu0 0.0
    %624 = vmatpush1.msra.mxu0 0.0
    %625 = vmatprep.subr.mxu0 0.0
    %626 = vmatpush1.msra.mxu0 0.0
    %627 = vmatprep.subr.mxu0 0.0
    %628 = vmatpush1.msra.mxu0 0.0
    %629 = vmatprep.subr.mxu0 0.0
    %630 = vmatpush1.msra.mxu0 0.0
    %631 = vmatprep.subr.mxu0 0.0
    %632 = vmatpush1.msra.mxu0 0.0
    %633 = vmatprep.subr.mxu0 0.0
    %634 = vmatpush1.msra.mxu0 0.0
    %635 = vmatprep.subr.mxu0 0.0
    %636 = vmatpush1.msra.mxu0 0.0
    %637 = vmatprep.subr.mxu0 0.0
    %638 = vmatpush1.msra.mxu0 0.0
    %639 = vmatprep.subr.mxu0 0.0
    %640 = vmatpush1.msra.mxu0 0.0
    %641 = vmatprep.subr.mxu0 0.0
    %642 = vmatpush1.msra.mxu0 0.0
    %643 = vmatprep.subr.mxu0 0.0
    %644 = vmatpush1.msra.mxu0 0.0
    %645 = vmatprep.mubr.f32.mxu0 0.0
    %646 = vmatmul.mubr.f32.gmra.mrb[0].mxu0 %v576
    %v647 = vpop.f32.mrb[0].mxu0
    %v648 = vadd.f32 %v580, %v647
    %v649 = vpop.f32.mrb[0].mxu0
    %650 = vdwg.mxu0
    %v651 = vadd.f32 %v648, %v423
    %v652 = vlaneseq
    %v653 = vshrl.u32 %v652, 7
    %v654 = vsub.s32 0, %v653
    %v655 = vrot.slane %v492, %v654
    %656 = vmatprep.subr.mxu0 0.0
    %657 = vmatpush1.msra.mxu0 %v458
    %658 = vmatprep.subr.mxu0 0.0
    %659 = vmatpush1.msra.mxu0 %v459
    %660 = vmatprep.subr.mxu0 0.0
    %661 = vmatpush1.msra.mxu0 %v460
    %662 = vmatprep.subr.mxu0 0.0
    %663 = vmatpush1.msra.mxu0 %v461
    %664 = vmatprep.subr.mxu0 0.0
    %665 = vmatpush1.msra.mxu0 %v462
    %666 = vmatprep.subr.mxu0 0.0
    %667 = vmatpush1.msra.mxu0 %v463
    %668 = vmatprep.subr.mxu0 0.0
    %669 = vmatpush1.msra.mxu0 %v464
    %670 = vmatprep.subr.mxu0 0.0
    %671 = vmatpush1.msra.mxu0 %v465
    %672 = vmatprep.subr.mxu0 0.0
    %673 = vmatpush1.msra.mxu0 %v466
    %674 = vmatprep.subr.mxu0 0.0
    %675 = vmatpush1.msra.mxu0 %v467
    %676 = vmatprep.subr.mxu0 0.0
    %677 = vmatpush1.msra.mxu0 %v468
    %678 = vmatprep.subr.mxu0 0.0
    %679 = vmatpush1.msra.mxu0 %v469
    %680 = vmatprep.subr.mxu0 0.0
    %681 = vmatpush1.msra.mxu0 %v470
    %682 = vmatprep.subr.mxu0 0.0
    %683 = vmatpush1.msra.mxu0 %v471
    %684 = vmatprep.subr.mxu0 0.0
    %685 = vmatpush1.msra.mxu0 %v472
    %686 = vmatprep.subr.mxu0 0.0
    %687 = vmatpush1.msra.mxu0 %v473
    %688 = vmatprep.subr.mxu0 0.0
    %689 = vmatpush1.msra.mxu0 0.0
    %690 = vmatprep.subr.mxu0 0.0
    %691 = vmatpush1.msra.mxu0 0.0
    %692 = vmatprep.subr.mxu0 0.0
    %693 = vmatpush1.msra.mxu0 0.0
    %694 = vmatprep.subr.mxu0 0.0
    %695 = vmatpush1.msra.mxu0 0.0
    %696 = vmatprep.subr.mxu0 0.0
    %697 = vmatpush1.msra.mxu0 0.0
    %698 = vmatprep.subr.mxu0 0.0
    %699 = vmatpush1.msra.mxu0 0.0
    %700 = vmatprep.subr.mxu0 0.0
    %701 = vmatpush1.msra.mxu0 0.0
    %702 = vmatprep.subr.mxu0 0.0
    %703 = vmatpush1.msra.mxu0 0.0
    %704 = vmatprep.subr.mxu0 0.0
    %705 = vmatpush1.msra.mxu0 0.0
    %706 = vmatprep.subr.mxu0 0.0
    %707 = vmatpush1.msra.mxu0 0.0
    %708 = vmatprep.subr.mxu0 0.0
    %709 = vmatpush1.msra.mxu0 0.0
    %710 = vmatprep.subr.mxu0 0.0
    %711 = vmatpush1.msra.mxu0 0.0
    %712 = vmatprep.subr.mxu0 0.0
    %713 = vmatpush1.msra.mxu0 0.0
    %714 = vmatprep.subr.mxu0 0.0
    %715 = vmatpush1.msra.mxu0 0.0
    %716 = vmatprep.subr.mxu0 0.0
    %717 = vmatpush1.msra.mxu0 0.0
    %718 = vmatprep.subr.mxu0 0.0
    %719 = vmatpush1.msra.mxu0 0.0
    %720 = vmatprep.mubr.f32.mxu0 0.0
    %721 = vmatmul.mubr.f32.gmra.mrb[0].mxu0 %v651
    %v722 = vpop.f32.mrb[0].mxu0
    %v723 = vadd.f32 %v655, %v722
    %v724 = vpop.f32.mrb[0].mxu0
    %725 = vdwg.mxu0
    %v726 = vmul.f32 %v723, 0.5
    %v727 = vmul.f32 %v723, 0.044715
    %v728 = vmul.f32 %v727, %v723
    %v729 = vmul.f32 %v728, %v723
    %v730 = vadd.f32 %v723, %v729
    %v731 = vmul.f32 %v730, 0.7978846
    %v732 = vtanh.pop %v731
    %v733 = vadd.f32 %v732, 1.0
    %v734 = vmul.f32 %v726, %v733
    %v735 = vlaneseq
    %v736 = vshrl.u32 %v735, 7
    %v737 = vsub.s32 0, %v736
    %v738 = vrot.slane %v493, %v737
    %739 = vmatprep.subr.mxu0 0.0
    %740 = vmatpush1.msra.mxu0 %v474
    %741 = vmatprep.subr.mxu0 0.0
    %742 = vmatpush1.msra.mxu0 %v475
    %743 = vmatprep.subr.mxu0 0.0
    %744 = vmatpush1.msra.mxu0 %v476
    %745 = vmatprep.subr.mxu0 0.0
    %746 = vmatpush1.msra.mxu0 %v477
    %747 = vmatprep.subr.mxu0 0.0
    %748 = vmatpush1.msra.mxu0 %v478
    %749 = vmatprep.subr.mxu0 0.0
    %750 = vmatpush1.msra.mxu0 %v479
    %751 = vmatprep.subr.mxu0 0.0
    %752 = vmatpush1.msra.mxu0 %v480
    %753 = vmatprep.subr.mxu0 0.0
    %754 = vmatpush1.msra.mxu0 %v481
    %755 = vmatprep.subr.mxu0 0.0
    %756 = vmatpush1.msra.mxu0 %v482
    %757 = vmatprep.subr.mxu0 0.0
    %758 = vmatpush1.msra.mxu0 %v483
    %759 = vmatprep.subr.mxu0 0.0
    %760 = vmatpush1.msra.mxu0 %v484
    %761 = vmatprep.subr.mxu0 0.0
    %762 = vmatpush1.msra.mxu0 %v485
    %763 = vmatprep.subr.mxu0 0.0
    %764 = vmatpush1.msra.mxu0 %v486
    %765 = vmatprep.subr.mxu0 0.0
    %766 = vmatpush1.msra.mxu0 %v487
    %767 = vmatprep.subr.mxu0 0.0
    %768 = vmatpush1.msra.mxu0 %v488
    %769 = vmatprep.subr.mxu0 0.0
    %770 = vmatpush1.msra.mxu0 %v489
    %771 = vmatprep.subr.mxu0 0.0
    %772 = vmatpush1.msra.mxu0 0.0
    %773 = vmatprep.subr.mxu0 0.0
    %774 = vmatpush1.msra.mxu0 0.0
    %775 = vmatprep.subr.mxu0 0.0
    %776 = vmatpush1.msra.mxu0 0.0
    %777 = vmatprep.subr.mxu0 0.0
    %778 = vmatpush1.msra.mxu0 0.0
    %779 = vmatprep.subr.mxu0 0.0
    %780 = vmatpush1.msra.mxu0 0.0
    %781 = vmatprep.subr.mxu0 0.0
    %782 = vmatpush1.msra.mxu0 0.0
    %783 = vmatprep.subr.mxu0 0.0
    %784 = vmatpush1.msra.mxu0 0.0
    %785 = vmatprep.subr.mxu0 0.0
    %786 = vmatpush1.msra.mxu0 0.0
    %787 = vmatprep.subr.mxu0 0.0
    %788 = vmatpush1.msra.mxu0 0.0
    %789 = vmatprep.subr.mxu0 0.0
    %790 = vmatpush1.msra.mxu0 0.0
    %791 = vmatprep.subr.mxu0 0.0
    %792 = vmatpush1.msra.mxu0 0.0
    %793 = vmatprep.subr.mxu0 0.0
    %794 = vmatpush1.msra.mxu0 0.0
    %795 = vmatprep.subr.mxu0 0.0
    %796 = vmatpush1.msra.mxu0 0.0
    %797 = vmatprep.subr.mxu0 0.0
    %798 = vmatpush1.msra.mxu0 0.0
    %799 = vmatprep.subr.mxu0 0.0
    %800 = vmatpush1.msra.mxu0 0.0
    %801 = vmatprep.subr.mxu0 0.0
    %802 = vmatpush1.msra.mxu0 0.0
    %803 = vmatprep.mubr.f32.mxu0 0.0
    %804 = vmatmul.mubr.f32.gmra.mrb[0].mxu0 %v734
    %v805 = vpop.f32.mrb[0].mxu0
    %v806 = vadd.f32 %v738, %v805
    %v807 = vpop.f32.mrb[0].mxu0
    %808 = vdwg.mxu0
    %v809 = vlaneseq
    %v810 = vand.u32 %v809, 127
    %vm811 = vcmp.lt.s32.totalorder %v810, 32
    %v812 = vsel %vm811, %v806, -1e+30
    %813 = vmax.xlane.f32.xlu0 %v812
    %v814 = vpop.xlane.xlu0 %813
    %v815 = vsub.f32 %v812, %v814
    %v816 = vmul.f32 %v815, 1.442695
    %v817 = vpow.pop %v816
    %818 = vadd.xlane.f32.xlu0 %v817
    %v819 = vpop.xlane.xlu0 %818
    %v820 = vrcp.pop %v819
    %v821 = vmul.f32 %v817, %v820
    %822 = vst [vmem:[#allocation10] sm:$0xff] %v821
    // Predicated region
    $region38: #{tpu_custom_call.1} parent=1 // pred_check
      _
    $region39: #{tpu_custom_call.1} parent=1 // pred_check_branch
      %824 = sbr.rel (0) target = $region41
    $region40: #{tpu_custom_call.1} parent=1 // pred_region
      %s826 = ssub.s32 128, 128
      %827 = vsyncadd [#allocation4], %s826
      %s829 = sshll.u32 [#allocation10], 4
      %s830 = int_to_ptr.vmem [resolvable:$true] %s829
      %832 = dma.vmem_to_hbm [thread:$0]  %s830, 128, %s5, [#allocation4]
    $region41: #{tpu_custom_call.1} parent=1 // pred_fallthru
      _
    // Predicated region
    $region42: #{tpu_custom_call.1} parent=1 // pred_check
      _
    $region43: #{tpu_custom_call.1} parent=1 // pred_check_branch
      %834 = sbr.rel (0) target = $region45
    $region44: #{tpu_custom_call.1} parent=1 // pred_region
      %s836 = ssub.s32 128, 128
      %837 = vsyncadd [#allocation12], %s836
      %s839 = sshll.u32 [#allocation11], 4
      %s840 = int_to_ptr.vmem [resolvable:$true] %s839
      %842 = dma.vmem_to_hbm [thread:$0]  %s840, 128, %s6, [#allocation12]
    $region45: #{tpu_custom_call.1} parent=1 // pred_fallthru
      _
    // Predicated region
    $region46: #{tpu_custom_call.1} parent=1 // pred_check
      _
    $region47: #{tpu_custom_call.1} parent=1 // pred_check_branch
      %844 = sbr.rel (0) target = $region49
    $region48: #{tpu_custom_call.1} parent=1 // pred_region
      %845 = dma.done [#allocation4], 128
    $region49: #{tpu_custom_call.1} parent=1 // pred_fallthru
      _
    // Predicated region
    $region50: #{tpu_custom_call.1} parent=1 // pred_check
      _
    $region51: #{tpu_custom_call.1} parent=1 // pred_check_branch
      %847 = sbr.rel (0) target = $region53
    $region52: #{tpu_custom_call.1} parent=1 // pred_region
      %848 = dma.done [#allocation12], 128
    $region53: #{tpu_custom_call.1} parent=1 // pred_fallthru
      _
    %849 = vsyncpa [#allocation3], 1
    %850 = vsyncpa [#allocation6], 1
    %851 = vsyncpa [#allocation9], 1
    %852 = vsyncpa [#allocation4], 1
    %853 = vsyncpa [#allocation12], 1

</llo_original>
